<compile_context>
chip_gen: v5e
topology: v5e:2x2
jax: 0.10.0
libtpu: 0.0.40
codegen_flags: <defaults>
</compile_context>

<pallas_src>
import functools

import jax
import jax.numpy as jnp
from jax import lax
from jax.experimental import pallas as pl
from jax.experimental.pallas import tpu as pltpu


def _round_up(x, m):
    return (x + m - 1) // m * m


# ------------------------------ kernel bodies -------------------------------
def _mlp_tile(x_ref, w1_ref, b1_ref, w2_ref, b2_ref):
    # hidden = relu(x @ W1 + b1); MXU in the x/W dtype, f32 accumulation.
    h = jnp.dot(x_ref[...], w1_ref[...], preferred_element_type=jnp.float32)
    h = jnp.maximum(h + b1_ref[...], 0.0)
    # TODO(synk): nn.Dropout is identity in eval mode; training-mode dropout
    # (pltpu.prng_random_bits mask) is intentionally not applied here.
    z = jnp.dot(h.astype(w2_ref.dtype), w2_ref[...],
                preferred_element_type=jnp.float32)
    return z + b2_ref[...]


def _tile_loss(z, y_ref, *, n_valid_rows, n_out, tb):
    # numerically-stable BCEWithLogits, reduction='sum', on the real O columns:
    #   max(z,0) - z*y + log(1 + exp(-|z|))
    zl = z[:, :n_out]
    y = y_ref[...].astype(jnp.float32)
    per = jnp.maximum(zl, 0.0) - zl * y + jnp.log1p(jnp.exp(-jnp.abs(zl)))
    rows = pl.program_id(0) * tb + lax.broadcasted_iota(jnp.int32, per.shape, 0)
    per = jnp.where(rows < n_valid_rows, per, 0.0)  # mask ragged-tail rows
    return jnp.sum(per)


def _mlp_logits_kernel(x_ref, w1_ref, b1_ref, w2_ref, b2_ref, out_ref):
    out_ref[...] = _mlp_tile(x_ref, w1_ref, b1_ref, w2_ref, b2_ref)


def _mlp_loss_logits_kernel(x_ref, w1_ref, b1_ref, w2_ref, b2_ref, y_ref,
                            out_ref, lpart_ref, *, n_valid_rows, n_out, tb):
    z = _mlp_tile(x_ref, w1_ref, b1_ref, w2_ref, b2_ref)
    out_ref[...] = z                      # lane-dense (O padded to 128) store
    t = _tile_loss(z, y_ref, n_valid_rows=n_valid_rows, n_out=n_out, tb=tb)
    lpart_ref[...] = jnp.zeros(lpart_ref.shape, jnp.float32) + t


def _mlp_loss_only_kernel(x_ref, w1_ref, b1_ref, w2_ref, b2_ref, y_ref,
                          lpart_ref, *, n_valid_rows, n_out, tb):
    z = _mlp_tile(x_ref, w1_ref, b1_ref, w2_ref, b2_ref)
    t = _tile_loss(z, y_ref, n_valid_rows=n_valid_rows, n_out=n_out, tb=tb)
    lpart_ref[...] = jnp.zeros(lpart_ref.shape, jnp.float32) + t


# ------------------------------ host wrapper --------------------------------
def mlp_forward(x, w1, b1, w2, b2, labels=None, *, tb_max=2048,
                compute_dtype=jnp.bfloat16, return_logits=True):
    B, D = x.shape
    H = w1.shape[1]
    O = w2.shape[1]

    O_pad = _round_up(O, 128)            # lane-dense logits store
    tb = min(tb_max, _round_up(B, 8))    # batch tile, multiple of 8
    num_tiles = pl.cdiv(B, tb)           # ragged tail handled in-kernel
    grid = (num_tiles,)

    # MXU inputs in compute_dtype (bf16 default); bias add / loss math in f32.
    xc = x.astype(compute_dtype)
    w1c = w1.astype(compute_dtype)
    w2c = w2.astype(compute_dtype)
    b1f = b1.astype(jnp.float32)
    b2f = b2.astype(jnp.float32)
    if O_pad != O:   # weight-side lane padding only (tiny, once per call)
        w2c = jnp.pad(w2c, ((0, 0), (0, O_pad - O)))
        b2f = jnp.pad(b2f, ((0, 0), (0, O_pad - O)))

    # TODO(synk): W1/W2 are kept fully resident in VMEM (fine at these dims);
    # re-derive the budget against v7x's 64 MiB and add a K/H reduction axis
    # before scaling D/H.
    in_specs = [
        pl.BlockSpec((tb, D), lambda i: (i, 0)),      # x (batch tiled)
        pl.BlockSpec((D, H), lambda i: (0, 0)),       # W1 (resident)
        pl.BlockSpec((1, H), lambda i: (0, 0)),       # b1
        pl.BlockSpec((H, O_pad), lambda i: (0, 0)),   # W2 (resident, lane-pad)
        pl.BlockSpec((1, O_pad), lambda i: (0, 0)),   # b2
    ]
    logits_spec = pl.BlockSpec((tb, O_pad), lambda i: (i, 0))
    cparams = pltpu.CompilerParams(dimension_semantics=("parallel",))

    if labels is None:
        out = pl.pallas_call(
            _mlp_logits_kernel,
            out_shape=jax.ShapeDtypeStruct((B, O_pad), jnp.float32),
            grid_spec=pltpu.PrefetchScalarGridSpec(
                num_scalar_prefetch=0, grid=grid,
                in_specs=in_specs, out_specs=logits_spec),
            compiler_params=cparams,
        )(xc, w1c, b1f, w2c, b2f)
        return out[:, :O]

    # Labels: unpadded, narrow dtype; cast to f32 inside the kernel.
    y = labels if jnp.issubdtype(labels.dtype, jnp.floating) \
        else labels.astype(jnp.bfloat16)
    label_spec = pl.BlockSpec((tb, O), lambda i: (i, 0))
    lpart_spec = pl.BlockSpec((1, 8, 128), lambda i: (i, 0, 0))
    lpart_shape = jax.ShapeDtypeStruct((num_tiles, 8, 128), jnp.float32)

    if return_logits:
        kernel = functools.partial(_mlp_loss_logits_kernel,
                                   n_valid_rows=B, n_out=O, tb=tb)
        logits, lpart = pl.pallas_call(
            kernel,
            out_shape=(jax.ShapeDtypeStruct((B, O_pad), jnp.float32),
                       lpart_shape),
            grid_spec=pltpu.PrefetchScalarGridSpec(
                num_scalar_prefetch=0, grid=grid,
                in_specs=in_specs + [label_spec],
                out_specs=(logits_spec, lpart_spec)),
            compiler_params=cparams,
        )(xc, w1c, b1f, w2c, b2f, y)
        return jnp.sum(lpart[:, 0, 0]), logits[:, :O]

    kernel = functools.partial(_mlp_loss_only_kernel,
                               n_valid_rows=B, n_out=O, tb=tb)
    lpart = pl.pallas_call(
        kernel,
        out_shape=lpart_shape,
        grid_spec=pltpu.PrefetchScalarGridSpec(
            num_scalar_prefetch=0, grid=grid,
            in_specs=in_specs + [label_spec],
            out_specs=lpart_spec),
        compiler_params=cparams,
    )(xc, w1c, b1f, w2c, b2f, y)
    return jnp.sum(lpart[:, 0, 0])


# ------------------------------- module glue --------------------------------
def init_mlp_params(key, input_dim, output_dim, hidden_dim=128):
    k1, k2, k3, k4 = jax.random.split(key, 4)
    # PyTorch nn.Linear default init: U(-1/sqrt(fan_in), 1/sqrt(fan_in))
    lim1 = 1.0 / jnp.sqrt(jnp.float32(input_dim))
    lim2 = 1.0 / jnp.sqrt(jnp.float32(hidden_dim))
    w1 = jax.random.uniform(k1, (input_dim, hidden_dim), jnp.float32, -lim1, lim1)
    b1 = jax.random.uniform(k2, (1, hidden_dim), jnp.float32, -lim1, lim1)
    w2 = jax.random.uniform(k3, (hidden_dim, output_dim), jnp.float32, -lim2, lim2)
    b2 = jax.random.uniform(k4, (1, output_dim), jnp.float32, -lim2, lim2)
    return w1, b1, w2, b2


def mlp_apply(params, features, labels=None, **kw):
    w1, b1, w2, b2 = params
    return mlp_forward(features, w1, b1, w2, b2, labels, **kw)


def _ref_forward(params, x, labels=None, compute_dtype=jnp.float32):
    w1, b1, w2, b2 = params
    h = jnp.dot(x.astype(compute_dtype), w1.astype(compute_dtype),
                preferred_element_type=jnp.float32) + b1
    h = jnp.maximum(h, 0.0)
    logits = jnp.dot(h.astype(compute_dtype), w2.astype(compute_dtype),
                     preferred_element_type=jnp.float32) + b2
    if labels is None:
        return logits
    y = labels.astype(jnp.float32)
    loss = jnp.sum(jnp.maximum(logits, 0.0) - logits * y
                   + jnp.log1p(jnp.exp(-jnp.abs(logits))))
    return loss, logits


if __name__ == "__main__":
    key = jax.random.PRNGKey(0)
    k_param, k_x, k_y, k_x2, k_y2 = jax.random.split(key, 5)

    batch, input_dim, hidden_dim, output_dim = 8, 32, 128, 8
    params = init_mlp_params(k_param, input_dim, output_dim, hidden_dim)

    # --- small case (single grid step), exact f32 path ---
    x = jax.random.normal(k_x, (batch, input_dim), dtype=jnp.float32)
    labels = jax.random.bernoulli(k_y, 0.5, (batch, output_dim)).astype(jnp.float32)

    logits = mlp_apply(params, x, compute_dtype=jnp.float32)
    jax.block_until_ready(logits)
    loss, logits2 = mlp_apply(params, x, labels, compute_dtype=jnp.float32)
    jax.block_until_ready((loss, logits2))

    ref_loss, ref_logits = _ref_forward(params, x, labels)
    assert jnp.allclose(logits, ref_logits, atol=1e-5, rtol=1e-5)
    assert jnp.allclose(logits2, ref_logits, atol=1e-5, rtol=1e-5)
    assert jnp.allclose(loss, ref_loss, atol=1e-4, rtol=1e-5)

    # --- multi-tile case: grid of 4 steps, ragged tail, f32 path ---
    b2_sz = 200  # not a multiple of the tile -> tail rows masked / clipped
    x2 = jax.random.normal(k_x2, (b2_sz, input_dim), dtype=jnp.float32)
    y2 = jax.random.bernoulli(k_y2, 0.5, (b2_sz, output_dim)).astype(jnp.float32)

    loss_b, logits_b = mlp_apply(params, x2, y2, tb_max=64,
                                 compute_dtype=jnp.float32)
    jax.block_until_ready((loss_b, logits_b))
    ref_loss_b, ref_logits_b = _ref_forward(params, x2, y2)
    assert jnp.allclose(logits_b, ref_logits_b, atol=1e-5, rtol=1e-5)
    assert jnp.allclose(loss_b, ref_loss_b, atol=1e-2, rtol=1e-5)

    # loss-only fast path (skips the logits HBM store)
    loss_only = mlp_apply(params, x2, y2, tb_max=64, compute_dtype=jnp.float32,
                          return_logits=False)
    jax.block_until_ready(loss_only)
    assert jnp.allclose(loss_only, ref_loss_b, atol=1e-2, rtol=1e-5)

    # --- default perf path: bf16 MXU, big tile (single ragged block) ---
    loss_bf, logits_bf = mlp_apply(params, x2, y2)   # tb_max=2048, bf16
    jax.block_until_ready((loss_bf, logits_bf))
    ref_loss_bf, ref_logits_bf = _ref_forward(params, x2, y2,
                                              compute_dtype=jnp.bfloat16)
    assert jnp.allclose(logits_bf, ref_logits_bf, atol=5e-2, rtol=1e-2)
    assert jnp.allclose(loss_bf, ref_loss_bf, atol=1.0, rtol=2e-3)

    print("KERNEL_OK")
</pallas_src>

<mosaic_0001>
module attributes {stable_mosaic.version = 11 : i64} {
  func.func @_mlp_logits_kernel(%arg0: i32, %arg1: memref<8x32xf32, #tpu.memory_space<vmem>>, %arg2: memref<32x128xf32, #tpu.memory_space<vmem>>, %arg3: memref<1x128xf32, #tpu.memory_space<vmem>>, %arg4: memref<128x128xf32, #tpu.memory_space<vmem>>, %arg5: memref<1x128xf32, #tpu.memory_space<vmem>>, %arg6: memref<8x128xf32, #tpu.memory_space<vmem>>) attributes {dimension_semantics = [#tpu.dimension_semantics<parallel>], iteration_bounds = array<i64: 1>, scalar_prefetch = 0 : i64, scratch_operands = 0 : i64, tpu.core_type = #tpu.core_type<tc>, window_params = [{transform_indices = @transform_0, window_bounds = array<i64: 8, 32>}, {pipeline_mode = #tpu.pipeline_mode<synchronous>, transform_indices = @transform_1, window_bounds = array<i64: 32, 128>}, {pipeline_mode = #tpu.pipeline_mode<synchronous>, transform_indices = @transform_2, window_bounds = array<i64: 1, 128>}, {pipeline_mode = #tpu.pipeline_mode<synchronous>, transform_indices = @transform_3, window_bounds = array<i64: 128, 128>}, {pipeline_mode = #tpu.pipeline_mode<synchronous>, transform_indices = @transform_4, window_bounds = array<i64: 1, 128>}, {transform_indices = @transform_5, window_bounds = array<i64: 8, 128>}]} {
    %c0 = arith.constant 0 : index
    %c0_0 = arith.constant 0 : index
    %0 = vector.load %arg1[%c0, %c0_0] : memref<8x32xf32, #tpu.memory_space<vmem>>, vector<8x32xf32>
    %c0_1 = arith.constant 0 : index
    %c0_2 = arith.constant 0 : index
    %1 = vector.load %arg2[%c0_1, %c0_2] : memref<32x128xf32, #tpu.memory_space<vmem>>, vector<32x128xf32>
    %cst = arith.constant dense<0.000000e+00> : vector<8x128xf32>
    %2 = tpu.matmul %0, %1, %cst {dimension_numbers = #tpu.dot_dimension_numbers<[1], [0], [0], [1], [0, 0, 1, 1], [], []>} : vector<8x32xf32>, vector<32x128xf32>, vector<8x128xf32> -> vector<8x128xf32>
    %c0_3 = arith.constant 0 : index
    %c0_4 = arith.constant 0 : index
    %3 = vector.load %arg3[%c0_3, %c0_4] : memref<1x128xf32, #tpu.memory_space<vmem>>, vector<1x128xf32>
    %4 = vector.broadcast %3 : vector<1x128xf32> to vector<8x128xf32>
    %5 = arith.addf %2, %4 : vector<8x128xf32>
    %cst_5 = arith.constant 0.000000e+00 : f32
    %6 = vector.broadcast %cst_5 : f32 to vector<8x128xf32>
    %7 = arith.maximumf %5, %6 : vector<8x128xf32>
    %c0_6 = arith.constant 0 : index
    %c0_7 = arith.constant 0 : index
    %8 = vector.load %arg4[%c0_6, %c0_7] : memref<128x128xf32, #tpu.memory_space<vmem>>, vector<128x128xf32>
    %cst_8 = arith.constant dense<0.000000e+00> : vector<8x128xf32>
    %9 = tpu.matmul %7, %8, %cst_8 {dimension_numbers = #tpu.dot_dimension_numbers<[1], [0], [0], [1], [0, 0, 1, 1], [], []>} : vector<8x128xf32>, vector<128x128xf32>, vector<8x128xf32> -> vector<8x128xf32>
    %c0_9 = arith.constant 0 : index
    %c0_10 = arith.constant 0 : index
    %10 = vector.load %arg5[%c0_9, %c0_10] : memref<1x128xf32, #tpu.memory_space<vmem>>, vector<1x128xf32>
    %11 = vector.broadcast %10 : vector<1x128xf32> to vector<8x128xf32>
    %12 = arith.addf %9, %11 : vector<8x128xf32>
    %c0_11 = arith.constant 0 : index
    %c0_12 = arith.constant 0 : index
    %13 = vector.load %arg6[%c0_11, %c0_12] : memref<8x128xf32, #tpu.memory_space<vmem>>, vector<8x128xf32>
    tpu.vector_store %arg6[%c0_11, %c0_12], %12 {strides = array<i32>} : memref<8x128xf32, #tpu.memory_space<vmem>>, vector<8x128xf32>,
    return
  }
  func.func @transform_0(%arg0: i32) -> (i32, i32) {
    %c0_i32 = arith.constant 0 : i32
    %c0_i32_0 = arith.constant 0 : i32
    return %arg0, %c0_i32 : i32, i32
  }
  func.func @transform_1(%arg0: i32) -> (i32, i32) {
    %c0_i32 = arith.constant 0 : i32
    %c0_i32_0 = arith.constant 0 : i32
    %c0_i32_1 = arith.constant 0 : i32
    return %c0_i32, %c0_i32_0 : i32, i32
  }
  func.func @transform_2(%arg0: i32) -> (i32, i32) {
    %c0_i32 = arith.constant 0 : i32
    %c0_i32_0 = arith.constant 0 : i32
    %c0_i32_1 = arith.constant 0 : i32
    return %c0_i32, %c0_i32_0 : i32, i32
  }
  func.func @transform_3(%arg0: i32) -> (i32, i32) {
    %c0_i32 = arith.constant 0 : i32
    %c0_i32_0 = arith.constant 0 : i32
    %c0_i32_1 = arith.constant 0 : i32
    return %c0_i32, %c0_i32_0 : i32, i32
  }
  func.func @transform_4(%arg0: i32) -> (i32, i32) {
    %c0_i32 = arith.constant 0 : i32
    %c0_i32_0 = arith.constant 0 : i32
    %c0_i32_1 = arith.constant 0 : i32
    return %c0_i32, %c0_i32_0 : i32, i32
  }
  func.func @transform_5(%arg0: i32) -> (i32, i32) {
    %c0_i32 = arith.constant 0 : i32
    %c0_i32_0 = arith.constant 0 : i32
    return %arg0, %c0_i32 : i32, i32
  }
}

</mosaic_0001>

<llo_original>
// kernel: tpu_custom_call.1
$region0: #{tpu_custom_call.1}
  #allocation0 [shape = 'u32[]', space=smem, size = 0x4, offset = 0x4, fixed_abs, tag = 'smem constant byte address 0x4 - core index']
  #allocation1 [shape = 'u32[72,128]{1,0:T(1,128)}', space=vmem, size = 0x9000, scoped, tag = 'internal scratch']
  %s0 = inlined_call_operand.hbm [shape: f32[8,32], index: 0, kind: input, shape index: {}]
  %s1 = inlined_call_operand.hbm [shape: f32[32,128], index: 1, kind: input, shape index: {}]
  %s2 = inlined_call_operand.vmem [shape: f32[1,128], index: 2, kind: input, shape index: {}]
  %s3 = inlined_call_operand.hbm [shape: f32[128,128], index: 3, kind: input, shape index: {}]
  %s4 = inlined_call_operand.vmem [shape: f32[1,128], index: 4, kind: input, shape index: {}]
  %s5 = inlined_call_operand.hbm [shape: f32[8,128], index: 5, kind: output, shape index: {}]
  %s6 = sld [smem:[#allocation0]]
  $region42: #{tpu_custom_call.1} parent=0
    _
  %s8 = ssub.s32 1, %s6
  %s9 = scalar_select 0, %s8, %s6
  $region1: #{tpu_custom_call.1} parent=0
    #allocation2 [shape = 'u8[4096]{0}', space=vmem, size = 0x1000, scoped, tag = 'input window, operand 0, single buffered']
    #allocation3 [shape = 's32[1]{0}', space=sflag, size = 0x4, scoped, tag = 'scoped memory for tpu_custom_call.1']
    #allocation4 [shape = 's32[1]{0}', space=sflag, size = 0x4, scoped, tag = 'scoped memory for tpu_custom_call.1']
    #allocation5 [shape = 'u8[16384]{0}', space=vmem, size = 0x4000, scoped, tag = 'input window, operand 1, single buffered']
    #allocation6 [shape = 's32[1]{0}', space=sflag, size = 0x4, scoped, tag = 'scoped memory for tpu_custom_call.1']
    #allocation7 [shape = 'u8[65536]{0}', space=vmem, size = 0x10000, scoped, tag = 'input window, operand 3, single buffered']
    #allocation8 [shape = 'u8[4096]{0}', space=vmem, size = 0x1000, scoped, tag = 'output window, operand 0, single buffered']
    %10 = vsyncpa [#allocation3], 0
    %11 = vsyncpa [#allocation6], 0
    %12 = vsyncpa [#allocation4], 0
    // Predicated region
    $region2: #{tpu_custom_call.1} parent=1 // pred_check
      _
    $region3: #{tpu_custom_call.1} parent=1 // pred_check_branch
      %14 = sbr.rel (0) target = $region5
    $region4: #{tpu_custom_call.1} parent=1 // pred_region
      %16 = vsyncadd [#allocation3], 0
      %s18 = sshll.u32 %s0, 4
      %s19 = int_to_ptr.hbm [resolvable:$true] %s18
      %s20 = sshll.u32 [#allocation2], 4
      %s21 = int_to_ptr.vmem [resolvable:$true] %s20
      %23 = dma.hbm_to_vmem [thread:$0]  %s19, 128, %s21, [#allocation3]
    $region5: #{tpu_custom_call.1} parent=1 // pred_fallthru
      _
    // Predicated region
    $region6: #{tpu_custom_call.1} parent=1 // pred_check
      _
    $region7: #{tpu_custom_call.1} parent=1 // pred_check_branch
      %25 = sbr.rel (0) target = $region9
    $region8: #{tpu_custom_call.1} parent=1 // pred_region
      %27 = vsyncadd [#allocation6], 0
      %s28 = sshll.u32 %s1, 4
      %s29 = int_to_ptr.hbm [resolvable:$true] %s28
      %s30 = sshll.u32 [#allocation5], 4
      %s31 = int_to_ptr.vmem [resolvable:$true] %s30
      %36 = dma.hbm_to_vmem [thread:$0]  %s29, 512, %s31, [#allocation6], 128, 128, 8
    $region9: #{tpu_custom_call.1} parent=1 // pred_fallthru
      _
    // Predicated region
    $region10: #{tpu_custom_call.1} parent=1 // pred_check
      _
    $region11: #{tpu_custom_call.1} parent=1 // pred_check_branch
      %38 = sbr.rel (0) target = $region13
    $region12: #{tpu_custom_call.1} parent=1 // pred_region
      _
    $region13: #{tpu_custom_call.1} parent=1 // pred_fallthru
      _
    // Predicated region
    $region14: #{tpu_custom_call.1} parent=1 // pred_check
      _
    $region15: #{tpu_custom_call.1} parent=1 // pred_check_branch
      %40 = sbr.rel (0) target = $region17
    $region16: #{tpu_custom_call.1} parent=1 // pred_region
      %42 = vsyncadd [#allocation6], 0
      %s43 = sshll.u32 %s3, 4
      %s44 = int_to_ptr.hbm [resolvable:$true] %s43
      %s45 = sshll.u32 [#allocation7], 4
      %s46 = int_to_ptr.vmem [resolvable:$true] %s45
      %51 = dma.hbm_to_vmem [thread:$0]  %s44, 2048, %s46, [#allocation6], 128, 128, 8
    $region17: #{tpu_custom_call.1} parent=1 // pred_fallthru
      _
    // Predicated region
    $region18: #{tpu_custom_call.1} parent=1 // pred_check
      _
    $region19: #{tpu_custom_call.1} parent=1 // pred_check_branch
      %53 = sbr.rel (0) target = $region21
    $region20: #{tpu_custom_call.1} parent=1 // pred_region
      _
    $region21: #{tpu_custom_call.1} parent=1 // pred_fallthru
      _
    // Predicated region
    $region22: #{tpu_custom_call.1} parent=1 // pred_check
      _
    $region23: #{tpu_custom_call.1} parent=1 // pred_check_branch
      %55 = sbr.rel (0) target = $region25
    $region24: #{tpu_custom_call.1} parent=1 // pred_region
      %57 = dma.done [#allocation3], 128
    $region25: #{tpu_custom_call.1} parent=1 // pred_fallthru
      _
    // Predicated region
    $region26: #{tpu_custom_call.1} parent=1 // pred_check
      _
    $region27: #{tpu_custom_call.1} parent=1 // pred_check_branch
      %59 = sbr.rel (0) target = $region29
    $region28: #{tpu_custom_call.1} parent=1 // pred_region
      %61 = dma.done [#allocation6], 512
    $region29: #{tpu_custom_call.1} parent=1 // pred_fallthru
      _
    // Predicated region
    $region30: #{tpu_custom_call.1} parent=1 // pred_check
      _
    $region31: #{tpu_custom_call.1} parent=1 // pred_check_branch
      %63 = sbr.rel (0) target = $region33
    $region32: #{tpu_custom_call.1} parent=1 // pred_region
      %65 = dma.done [#allocation6], 2048
    $region33: #{tpu_custom_call.1} parent=1 // pred_fallthru
      _
    %v66 = vld [vmem:[#allocation2] sm:$0xff]
    %v67 = vld [vmem:[#allocation5] sm:$0xff]
    %v68 = vld [vmem:[#allocation5 + $0x8] sm:$0xff]
    %v69 = vld [vmem:[#allocation5 + $0x10] sm:$0xff]
    %v70 = vld [vmem:[#allocation5 + $0x18] sm:$0xff]
    %v71 = vld [vmem:[%s2] sm:$0x1]
    %v73 = vperm.slane %v71, 0
    %vm75 = vcmask 261120
    %v77 = vsel %vm75, %v66, 0
    %79 = vmatpush.msra.mxu0 0.0
    %80 = vmatpush.msra.mxu0 0.0
    %81 = vmatpush.msra.mxu0 0.0
    %82 = vmatpush.msra.mxu0 0.0
    %83 = vmatpush.msra.mxu0 0.0
    %84 = vmatpush.msra.mxu0 0.0
    %85 = vmatpush.msra.mxu0 0.0
    %86 = vmatpush.msra.mxu0 0.0
    %87 = vmatpush.msra.mxu0 0.0
    %88 = vmatpush.msra.mxu0 0.0
    %89 = vmatpush.msra.mxu0 0.0
    %90 = vmatpush.msra.mxu0 0.0
    %91 = vmatpush.msra.mxu0 %v70
    %92 = vmatpush.msra.mxu0 %v69
    %93 = vmatpush.msra.mxu0 %v68
    %94 = vmatpush.msra.mxu0 %v67
    %95 = vmatmul.f32.gmra.mxu0 %v77
    %v96 = vpop.f32.mrf.mxu0
    %v97 = vadd.f32 %v73, %v96
    %98 = vdwg.mxu0
    %v99 = vmax.f32 %v97, 0.0
    %v100 = vld [vmem:[#allocation7] sm:$0xff]
    %v101 = vld [vmem:[#allocation7 + $0x8] sm:$0xff]
    %v102 = vld [vmem:[#allocation7 + $0x10] sm:$0xff]
    %v103 = vld [vmem:[#allocation7 + $0x18] sm:$0xff]
    %v104 = vld [vmem:[#allocation7 + $0x20] sm:$0xff]
    %v105 = vld [vmem:[#allocation7 + $0x28] sm:$0xff]
    %v106 = vld [vmem:[#allocation7 + $0x30] sm:$0xff]
    %v107 = vld [vmem:[#allocation7 + $0x38] sm:$0xff]
    %v108 = vld [vmem:[#allocation7 + $0x40] sm:$0xff]
    %v109 = vld [vmem:[#allocation7 + $0x48] sm:$0xff]
    %v110 = vld [vmem:[#allocation7 + $0x50] sm:$0xff]
    %v111 = vld [vmem:[#allocation7 + $0x58] sm:$0xff]
    %v112 = vld [vmem:[#allocation7 + $0x60] sm:$0xff]
    %v113 = vld [vmem:[#allocation7 + $0x68] sm:$0xff]
    %v114 = vld [vmem:[#allocation7 + $0x70] sm:$0xff]
    %v115 = vld [vmem:[#allocation7 + $0x78] sm:$0xff]
    %v116 = vld [vmem:[%s4] sm:$0x1]
    %v118 = vperm.slane %v116, 0
    %120 = vmatpush.msra.mxu0 %v115
    %121 = vmatpush.msra.mxu0 %v114
    %122 = vmatpush.msra.mxu0 %v113
    %123 = vmatpush.msra.mxu0 %v112
    %124 = vmatpush.msra.mxu0 %v111
    %125 = vmatpush.msra.mxu0 %v110
    %126 = vmatpush.msra.mxu0 %v109
    %127 = vmatpush.msra.mxu0 %v108
    %128 = vmatpush.msra.mxu0 %v107
    %129 = vmatpush.msra.mxu0 %v106
    %130 = vmatpush.msra.mxu0 %v105
    %131 = vmatpush.msra.mxu0 %v104
    %132 = vmatpush.msra.mxu0 %v103
    %133 = vmatpush.msra.mxu0 %v102
    %134 = vmatpush.msra.mxu0 %v101
    %135 = vmatpush.msra.mxu0 %v100
    %136 = vmatmul.f32.gmra.mxu0 %v99
    %v137 = vpop.f32.mrf.mxu0
    %v138 = vadd.f32 %v118, %v137
    %139 = vdwg.mxu0
    %140 = vst [vmem:[#allocation8] sm:$0xff] %v138
    // Predicated region
    $region34: #{tpu_custom_call.1} parent=1 // pred_check
      _
    $region35: #{tpu_custom_call.1} parent=1 // pred_check_branch
      %142 = sbr.rel (0) target = $region37
    $region36: #{tpu_custom_call.1} parent=1 // pred_region
      %144 = vsyncadd [#allocation4], 0
      %s146 = sshll.u32 [#allocation8], 4
      %s147 = int_to_ptr.vmem [resolvable:$true] %s146
      %s148 = sshll.u32 %s5, 4
      %s149 = int_to_ptr.hbm [resolvable:$true] %s148
      %151 = dma.vmem_to_hbm [thread:$0]  %s147, 128, %s149, [#allocation4]
    $region37: #{tpu_custom_call.1} parent=1 // pred_fallthru
      _
    // Predicated region
    $region38: #{tpu_custom_call.1} parent=1 // pred_check
      _
    $region39: #{tpu_custom_call.1} parent=1 // pred_check_branch
      %153 = sbr.rel (0) target = $region41
    $region40: #{tpu_custom_call.1} parent=1 // pred_region
      %155 = dma.done [#allocation4], 128
    $region41: #{tpu_custom_call.1} parent=1 // pred_fallthru
      _
    %156 = vsyncpa [#allocation3], 1
    %157 = vsyncpa [#allocation6], 1
    %158 = vsyncpa [#allocation4], 1

</llo_original>
